<compile_context>
chip_gen: v7x
topology: tpu7x:2x2x1
jax: 0.10.0
libtpu: 0.0.40
codegen_flags: <defaults>
</compile_context>

<pallas_src>
import functools

import jax
import jax.numpy as jnp
from jax import lax
from jax.experimental import pallas as pl
from jax.experimental.pallas import tpu as pltpu

EPS = 1e-5
_MAX_SAMPLES_PER_TILE = 16   # in-kernel per-sample loop is statically unrolled


def _tpu_vmem_capacity_bytes():
    try:
        return int(pltpu.get_tpu_info().vmem_capacity_bytes)
    except Exception:                      # e.g. interpret mode / CPU fallback
        return 64 * 1024 * 1024


def _vmem_limit_bytes():
    # ~75% of physical VMEM: 96 MiB on v5e/v6e (128 MiB), 48 MiB on v7x (64 MiB).
    return min(_tpu_vmem_capacity_bytes() * 3 // 4, 100 * 1024 * 1024)


def _pick_samples_per_tile(n, c, l):
    """Samples per x-tile.  The raw f32 tile targets ~VMEM/20 so the
    double-buffered in/out blocks plus ~4-5x of in-kernel temporaries
    (bf16 taps + stacked operand + f32 conv) stay well under the VMEM limit."""
    budget = max(_tpu_vmem_capacity_bytes() // 20, 1 << 20)
    per_sample = max(c * l * 4, 1)
    cap = max(1, min(budget // per_sample, _MAX_SAMPLES_PER_TILE))
    best = 1
    for d in range(1, n + 1):
        if n % d == 0 and d <= cap:
            best = d
    return best


def _conv_sample(x2d, wv, mask_l, mask_r, *, stack_taps, compute_dtype):
    """Conv1d(k=3, pad=1, no bias) for one lane-dense (C, L) sample slice.

    x2d: (C, L) f32.  wv: (C_out, 3C) if stack_taps else (3, C_out, C_in), tap
    order [center (k=1), left (k=0), right (k=2)].  mask_l / mask_r: (1, L)
    zero-pad masks.  Returns the f32 conv output (C_out, L).
    """
    lanes = x2d.shape[-1]
    xc = x2d.astype(compute_dtype)
    # x[l-1]: lane roll by +1, column l == 0 is the zero pad.
    x_left = pltpu.roll(xc, shift=1, axis=1) * mask_l
    # x[l+1]: lane roll by -1 (== lanes-1), column l == L-1 is the zero pad.
    x_right = pltpu.roll(xc, shift=lanes - 1, axis=1) * mask_r
    if stack_taps:
        # One MXU call with contraction depth K = 3C.
        xs = jnp.concatenate([xc, x_left, x_right], axis=0)        # (3C, L)
        return jnp.dot(wv, xs, preferred_element_type=jnp.float32)
    conv = jnp.dot(wv[0], xc, preferred_element_type=jnp.float32)
    conv = conv + jnp.dot(wv[1], x_left, preferred_element_type=jnp.float32)
    conv = conv + jnp.dot(wv[2], x_right, preferred_element_type=jnp.float32)
    return conv


def _stats_kernel(x_ref, w_ref, ml_ref, mr_ref, sum_ref, sq_ref, *,
                  n_blk, stack_taps, compute_dtype):
    """Phase 1: per-channel sum / sum-of-squares of the conv output."""
    @pl.when(pl.program_id(1) == 0)
    def _():
        sum_ref[...] = jnp.zeros_like(sum_ref)
        sq_ref[...] = jnp.zeros_like(sq_ref)

    wv = w_ref[...]
    ml = ml_ref[...]
    mr = mr_ref[...]
    c_out = sum_ref.shape[1]
    s = jnp.zeros((c_out, 1), jnp.float32)
    q = jnp.zeros((c_out, 1), jnp.float32)
    for i in range(n_blk):                      # static unroll (n_blk <= 16)
        conv = _conv_sample(x_ref[i], wv, ml, mr,
                            stack_taps=stack_taps, compute_dtype=compute_dtype)
        s = s + jnp.sum(conv, axis=1, keepdims=True)
        q = q + jnp.sum(conv * conv, axis=1, keepdims=True)
    sum_ref[...] += s.reshape(sum_ref.shape)
    sq_ref[...] += q.reshape(sq_ref.shape)


def _apply_kernel(x_ref, w_ref, ml_ref, mr_ref, scale_ref, shift_ref, out_ref, *,
                  n_blk, stack_taps, compute_dtype):
    """Phase 2: conv (recomputed) + per-channel FMA (BN) + ReLU + residual."""
    wv = w_ref[...]
    ml = ml_ref[...]
    mr = mr_ref[...]
    scale = scale_ref[...]                      # (C, 1) f32
    shift = shift_ref[...]                      # (C, 1) f32
    for i in range(n_blk):                      # static unroll (n_blk <= 16)
        x2d = x_ref[i]                          # (C, L) f32 residual input
        conv = _conv_sample(x2d, wv, ml, mr,
                            stack_taps=stack_taps, compute_dtype=compute_dtype)
        y = conv * scale + shift                # BN as one per-channel FMA
        out_ref[i] = jnp.maximum(y, 0.0) + x2d  # ReLU + residual (f32)


def resblock_forward(x, w, gamma, beta, *, compute_dtype=jnp.bfloat16,
                     samples_per_tile=None):
    """x: (N, C, L) f32; w: (C_out, C_in, 3) f32; gamma/beta: (C,) f32."""
    n, c, l = x.shape
    m = n * l

    # Tap order everywhere: [center (k=1), left (k=0), right (k=2)].
    pack = (8 * 4) // jnp.dtype(compute_dtype).itemsize   # sublanes per tile
    stack_taps = (c % pack == 0)
    if stack_taps:
        w_k = jnp.concatenate([w[:, :, 1], w[:, :, 0], w[:, :, 2]],
                              axis=1).astype(compute_dtype)          # (C, 3C)
        w_block = (c, 3 * c)
    else:
        w_k = jnp.stack([w[:, :, 1], w[:, :, 0], w[:, :, 2]],
                        axis=0).astype(compute_dtype)                # (3, C, C)
        w_block = (3, c, c)

    # Zero-pad boundary masks, hoisted out of the kernels (resident blocks).
    pos = jnp.arange(l)
    mask_l = (pos > 0).astype(compute_dtype).reshape(1, l)
    mask_r = (pos < l - 1).astype(compute_dtype).reshape(1, l)

    if samples_per_tile is None:
        n_blk = _pick_samples_per_tile(n, c, l)
    else:
        n_blk = int(samples_per_tile)
        if not (1 <= n_blk <= n) or n % n_blk != 0:
            raise ValueError("samples_per_tile must evenly divide the batch")
    num_tiles = n // n_blk
    n_split = 2 if (num_tiles >= 2 and num_tiles % 2 == 0) else 1
    tiles_per_split = num_tiles // n_split

    vmem_limit = _vmem_limit_bytes()

    # ---- phase 1: BN statistics (two-way split + reduction over tiles) ------
    x_spec1 = pl.BlockSpec((n_blk, c, l),
                           lambda s, t: (s * tiles_per_split + t, 0, 0))
    w_spec1 = pl.BlockSpec(w_block, lambda s, t: (0,) * len(w_block))
    m_spec1 = pl.BlockSpec((1, l), lambda s, t: (0, 0))
    acc_spec = pl.BlockSpec((1, c, 1), lambda s, t: (s, 0, 0))

    csum, csq = pl.pallas_call(
        functools.partial(_stats_kernel, n_blk=n_blk, stack_taps=stack_taps,
                          compute_dtype=compute_dtype),
        out_shape=(jax.ShapeDtypeStruct((n_split, c, 1), jnp.float32),
                   jax.ShapeDtypeStruct((n_split, c, 1), jnp.float32)),
        grid=(n_split, tiles_per_split),
        in_specs=[x_spec1, w_spec1, m_spec1, m_spec1],
        out_specs=(acc_spec, acc_spec),
        compiler_params=pltpu.CompilerParams(
            dimension_semantics=("parallel", "arbitrary"),
            vmem_limit_bytes=vmem_limit),
    )(x, w_k, mask_l, mask_r)

    # Tiny (C,1) glue so the in-kernel BN epilogue is a single FMA.
    csum = jnp.sum(csum, axis=0)
    csq = jnp.sum(csq, axis=0)
    mean = csum / m
    var = jnp.maximum(csq / m - mean * mean, 0.0)   # biased (training-mode BN)
    # TODO(synk): Welford / centered combination if tighter stat parity needed.
    scale = gamma.reshape(c, 1) * lax.rsqrt(var + EPS)
    shift = beta.reshape(c, 1) - mean * scale

    # ---- phase 2: conv + BN + ReLU + residual, native (N, C, L) output ------
    x_spec2 = pl.BlockSpec((n_blk, c, l), lambda t: (t, 0, 0))
    w_spec2 = pl.BlockSpec(w_block, lambda t: (0,) * len(w_block))
    m_spec2 = pl.BlockSpec((1, l), lambda t: (0, 0))
    v_spec2 = pl.BlockSpec((c, 1), lambda t: (0, 0))

    out = pl.pallas_call(
        functools.partial(_apply_kernel, n_blk=n_blk, stack_taps=stack_taps,
                          compute_dtype=compute_dtype),
        out_shape=jax.ShapeDtypeStruct((n, c, l), jnp.float32),
        grid=(num_tiles,),
        in_specs=[x_spec2, w_spec2, m_spec2, m_spec2, v_spec2, v_spec2],
        out_specs=x_spec2,
        compiler_params=pltpu.CompilerParams(
            dimension_semantics=("parallel",),
            vmem_limit_bytes=vmem_limit),
    )(x, w_k, mask_l, mask_r, scale, shift)

    return out


def resblock_reference(x, w, gamma, beta):
    """Plain-JAX reference mirroring the PyTorch forward (training-mode BN)."""
    n, c, l = x.shape
    xpad = jnp.pad(x, ((0, 0), (0, 0), (1, 1)))
    conv = jnp.zeros((n, c, l), jnp.float32)
    for k in range(3):
        conv = conv + jnp.einsum("oc,ncl->nol", w[:, :, k], xpad[:, :, k:k + l])
    mean = jnp.mean(conv, axis=(0, 2), keepdims=True)
    var = jnp.mean((conv - mean) ** 2, axis=(0, 2), keepdims=True)
    norm = (conv - mean) / jnp.sqrt(var + EPS) * gamma.reshape(1, c, 1) \
        + beta.reshape(1, c, 1)
    return jnp.maximum(norm, 0.0) + x


if __name__ == "__main__":
    def init_params(key, c):
        # kaiming_normal_(nonlinearity='relu'): std = sqrt(2 / fan_in), fan_in = C*3
        fan_in = c * 3
        w = jax.random.normal(key, (c, c, 3), jnp.float32) * jnp.sqrt(2.0 / fan_in)
        gamma = jnp.full((c,), 0.5, jnp.float32)   # batch_norm.weight = 0.5
        beta = jnp.zeros((c,), jnp.float32)        # batch_norm.bias   = 0.0
        return w, gamma, beta

    k1, k2, k3, k4 = jax.random.split(jax.random.PRNGKey(0), 4)

    # Case 1: tiny module-default shapes (C=4 unaligned -> three-dot tap path).
    N, C, L = 2, 4, 16
    w, gamma, beta = init_params(k1, C)
    x = jax.random.normal(k2, (N, C, L), jnp.float32)
    ref = resblock_reference(x, w, gamma, beta)

    out_f32 = resblock_forward(x, w, gamma, beta, compute_dtype=jnp.float32)
    jax.block_until_ready(out_f32)
    assert out_f32.shape == (N, C, L)
    assert jnp.allclose(out_f32, ref, atol=1e-3, rtol=1e-3)

    out_bf16 = resblock_forward(x, w, gamma, beta, compute_dtype=jnp.bfloat16)
    jax.block_until_ready(out_bf16)
    assert jnp.allclose(out_bf16, ref, atol=3e-2, rtol=3e-2)

    # Case 2: aligned channels -> stacked K=3C matmul, multi-tile grid, and the
    # two-way phase-1 accumulator split (the v7x megacore path).
    N2, C2, L2 = 8, 16, 128
    w2, gamma2, beta2 = init_params(k3, C2)
    x2 = jax.random.normal(k4, (N2, C2, L2), jnp.float32)
    ref2 = resblock_reference(x2, w2, gamma2, beta2)

    out2_f32 = resblock_forward(x2, w2, gamma2, beta2,
                                compute_dtype=jnp.float32, samples_per_tile=2)
    jax.block_until_ready(out2_f32)
    assert jnp.allclose(out2_f32, ref2, atol=1e-3, rtol=1e-3)

    out2_bf16 = resblock_forward(x2, w2, gamma2, beta2,
                                 compute_dtype=jnp.bfloat16, samples_per_tile=2)
    jax.block_until_ready(out2_bf16)
    assert jnp.allclose(out2_bf16, ref2, atol=3e-2, rtol=3e-2)

    print("KERNEL_OK")
</pallas_src>

<mosaic_0001>
module attributes {stable_mosaic.version = 11 : i64} {
  func.func @_stats_kernel(%arg0: i32, %arg1: i32, %arg2: memref<2x4x16xf32, #tpu.memory_space<vmem>>, %arg3: memref<3x4x4xf32, #tpu.memory_space<vmem>>, %arg4: memref<1x16xf32, #tpu.memory_space<vmem>>, %arg5: memref<1x16xf32, #tpu.memory_space<vmem>>, %arg6: memref<1x4x1xf32, #tpu.memory_space<vmem>>, %arg7: memref<1x4x1xf32, #tpu.memory_space<vmem>>) attributes {dimension_semantics = [#tpu.dimension_semantics<parallel>, #tpu.dimension_semantics<arbitrary>], iteration_bounds = array<i64: 1, 1>, scalar_prefetch = 0 : i64, scratch_operands = 0 : i64, tpu.core_type = #tpu.core_type<tc>, window_params = [{transform_indices = @transform_0, window_bounds = array<i64: 2, 4, 16>}, {pipeline_mode = #tpu.pipeline_mode<synchronous>, transform_indices = @transform_1, window_bounds = array<i64: 3, 4, 4>}, {pipeline_mode = #tpu.pipeline_mode<synchronous>, transform_indices = @transform_2, window_bounds = array<i64: 1, 16>}, {pipeline_mode = #tpu.pipeline_mode<synchronous>, transform_indices = @transform_3, window_bounds = array<i64: 1, 16>}, {transform_indices = @transform_4, window_bounds = array<i64: 1, 4, 1>}, {transform_indices = @transform_5, window_bounds = array<i64: 1, 4, 1>}]} {
    %c0_i32 = arith.constant 0 : i32
    %0 = arith.cmpi eq, %arg1, %c0_i32 : i32
    %1 = arith.extui %0 : i1 to i32
    %c0_i32_0 = arith.constant 0 : i32
    %2 = arith.cmpi ne, %1, %c0_i32_0 : i32
    scf.if %2 {
      %cst_37 = arith.constant 0.000000e+00 : f32
      %68 = vector.broadcast %cst_37 : f32 to vector<1x4x1xf32>
      %c0_38 = arith.constant 0 : index
      %c0_39 = arith.constant 0 : index
      %c0_40 = arith.constant 0 : index
      %69 = vector.load %arg6[%c0_38, %c0_39, %c0_40] : memref<1x4x1xf32, #tpu.memory_space<vmem>>, vector<1x4x1xf32>
      tpu.vector_store %arg6[%c0_38, %c0_39, %c0_40], %68 {strides = array<i32>} : memref<1x4x1xf32, #tpu.memory_space<vmem>>, vector<1x4x1xf32>,
      %cst_41 = arith.constant 0.000000e+00 : f32
      %70 = vector.broadcast %cst_41 : f32 to vector<1x4x1xf32>
      %c0_42 = arith.constant 0 : index
      %c0_43 = arith.constant 0 : index
      %c0_44 = arith.constant 0 : index
      %71 = vector.load %arg7[%c0_42, %c0_43, %c0_44] : memref<1x4x1xf32, #tpu.memory_space<vmem>>, vector<1x4x1xf32>
      tpu.vector_store %arg7[%c0_42, %c0_43, %c0_44], %70 {strides = array<i32>} : memref<1x4x1xf32, #tpu.memory_space<vmem>>, vector<1x4x1xf32>,
    } else {
    }
    %c0 = arith.constant 0 : index
    %c0_1 = arith.constant 0 : index
    %c0_2 = arith.constant 0 : index
    %3 = vector.load %arg3[%c0, %c0_1, %c0_2] : memref<3x4x4xf32, #tpu.memory_space<vmem>>, vector<3x4x4xf32>
    %c0_3 = arith.constant 0 : index
    %c0_4 = arith.constant 0 : index
    %4 = vector.load %arg4[%c0_3, %c0_4] : memref<1x16xf32, #tpu.memory_space<vmem>>, vector<1x16xf32>
    %c0_5 = arith.constant 0 : index
    %c0_6 = arith.constant 0 : index
    %5 = vector.load %arg5[%c0_5, %c0_6] : memref<1x16xf32, #tpu.memory_space<vmem>>, vector<1x16xf32>
    %cst = arith.constant 0.000000e+00 : f32
    %6 = vector.broadcast %cst : f32 to vector<4x1xf32>
    %cst_7 = arith.constant 0.000000e+00 : f32
    %7 = vector.broadcast %cst_7 : f32 to vector<4x1xf32>
    %c0_8 = arith.constant 0 : index
    %c0_9 = arith.constant 0 : index
    %c0_10 = arith.constant 0 : index
    %8 = vector.load %arg2[%c0_8, %c0_9, %c0_10] : memref<2x4x16xf32, #tpu.memory_space<vmem>>, vector<1x4x16xf32>
    %9 = vector.shape_cast %8 : vector<1x4x16xf32> to vector<4x16xf32>
    %c1_i32 = arith.constant 1 : i32
    %10 = tpu.dynamic_rotate %9 by %c1_i32 dim 1 : vector<4x16xf32>, i32 -> vector<4x16xf32>
    %11 = vector.broadcast %4 : vector<1x16xf32> to vector<4x16xf32>
    %12 = arith.mulf %10, %11 : vector<4x16xf32>
    %c15_i32 = arith.constant 15 : i32
    %13 = tpu.dynamic_rotate %9 by %c15_i32 dim 1 : vector<4x16xf32>, i32 -> vector<4x16xf32>
    %14 = vector.broadcast %5 : vector<1x16xf32> to vector<4x16xf32>
    %15 = arith.mulf %13, %14 : vector<4x16xf32>
    %16 = vector.extract_strided_slice %3 {offsets = [0, 0, 0], sizes = [1, 4, 4], strides = [1, 1, 1]} : vector<3x4x4xf32> to vector<1x4x4xf32>
    %17 = vector.shape_cast %16 : vector<1x4x4xf32> to vector<4x4xf32>
    %cst_11 = arith.constant dense<0.000000e+00> : vector<4x16xf32>
    %18 = tpu.matmul %17, %9, %cst_11 {dimension_numbers = #tpu.dot_dimension_numbers<[1], [0], [0], [1], [0, 0, 1, 1], [], []>} : vector<4x4xf32>, vector<4x16xf32>, vector<4x16xf32> -> vector<4x16xf32>
    %19 = vector.extract_strided_slice %3 {offsets = [1, 0, 0], sizes = [1, 4, 4], strides = [1, 1, 1]} : vector<3x4x4xf32> to vector<1x4x4xf32>
    %20 = vector.shape_cast %19 : vector<1x4x4xf32> to vector<4x4xf32>
    %cst_12 = arith.constant dense<0.000000e+00> : vector<4x16xf32>
    %21 = tpu.matmul %20, %12, %cst_12 {dimension_numbers = #tpu.dot_dimension_numbers<[1], [0], [0], [1], [0, 0, 1, 1], [], []>} : vector<4x4xf32>, vector<4x16xf32>, vector<4x16xf32> -> vector<4x16xf32>
    %22 = arith.addf %18, %21 : vector<4x16xf32>
    %23 = vector.extract_strided_slice %3 {offsets = [2, 0, 0], sizes = [1, 4, 4], strides = [1, 1, 1]} : vector<3x4x4xf32> to vector<1x4x4xf32>
    %24 = vector.shape_cast %23 : vector<1x4x4xf32> to vector<4x4xf32>
    %cst_13 = arith.constant dense<0.000000e+00> : vector<4x16xf32>
    %25 = tpu.matmul %24, %15, %cst_13 {dimension_numbers = #tpu.dot_dimension_numbers<[1], [0], [0], [1], [0, 0, 1, 1], [], []>} : vector<4x4xf32>, vector<4x16xf32>, vector<4x16xf32> -> vector<4x16xf32>
    %26 = arith.addf %22, %25 : vector<4x16xf32>
    %cst_14 = arith.constant dense<0.000000e+00> : vector<4xf32>
    %27 = vector.multi_reduction <add>, %26, %cst_14 [1] : vector<4x16xf32> to vector<4xf32>
    %28 = vector.shape_cast %27 : vector<4xf32> to vector<4x1xf32>
    %29 = arith.addf %6, %28 : vector<4x1xf32>
    %30 = arith.mulf %26, %26 : vector<4x16xf32>
    %cst_15 = arith.constant dense<0.000000e+00> : vector<4xf32>
    %31 = vector.multi_reduction <add>, %30, %cst_15 [1] : vector<4x16xf32> to vector<4xf32>
    %32 = vector.shape_cast %31 : vector<4xf32> to vector<4x1xf32>
    %33 = arith.addf %7, %32 : vector<4x1xf32>
    %c1 = arith.constant 1 : index
    %c0_16 = arith.constant 0 : index
    %c0_17 = arith.constant 0 : index
    %34 = vector.load %arg2[%c1, %c0_16, %c0_17] : memref<2x4x16xf32, #tpu.memory_space<vmem>>, vector<1x4x16xf32>
    %35 = vector.shape_cast %34 : vector<1x4x16xf32> to vector<4x16xf32>
    %c1_i32_18 = arith.constant 1 : i32
    %36 = tpu.dynamic_rotate %35 by %c1_i32_18 dim 1 : vector<4x16xf32>, i32 -> vector<4x16xf32>
    %37 = vector.broadcast %4 : vector<1x16xf32> to vector<4x16xf32>
    %38 = arith.mulf %36, %37 : vector<4x16xf32>
    %c15_i32_19 = arith.constant 15 : i32
    %39 = tpu.dynamic_rotate %35 by %c15_i32_19 dim 1 : vector<4x16xf32>, i32 -> vector<4x16xf32>
    %40 = vector.broadcast %5 : vector<1x16xf32> to vector<4x16xf32>
    %41 = arith.mulf %39, %40 : vector<4x16xf32>
    %42 = vector.extract_strided_slice %3 {offsets = [0, 0, 0], sizes = [1, 4, 4], strides = [1, 1, 1]} : vector<3x4x4xf32> to vector<1x4x4xf32>
    %43 = vector.shape_cast %42 : vector<1x4x4xf32> to vector<4x4xf32>
    %cst_20 = arith.constant dense<0.000000e+00> : vector<4x16xf32>
    %44 = tpu.matmul %43, %35, %cst_20 {dimension_numbers = #tpu.dot_dimension_numbers<[1], [0], [0], [1], [0, 0, 1, 1], [], []>} : vector<4x4xf32>, vector<4x16xf32>, vector<4x16xf32> -> vector<4x16xf32>
    %45 = vector.extract_strided_slice %3 {offsets = [1, 0, 0], sizes = [1, 4, 4], strides = [1, 1, 1]} : vector<3x4x4xf32> to vector<1x4x4xf32>
    %46 = vector.shape_cast %45 : vector<1x4x4xf32> to vector<4x4xf32>
    %cst_21 = arith.constant dense<0.000000e+00> : vector<4x16xf32>
    %47 = tpu.matmul %46, %38, %cst_21 {dimension_numbers = #tpu.dot_dimension_numbers<[1], [0], [0], [1], [0, 0, 1, 1], [], []>} : vector<4x4xf32>, vector<4x16xf32>, vector<4x16xf32> -> vector<4x16xf32>
    %48 = arith.addf %44, %47 : vector<4x16xf32>
    %49 = vector.extract_strided_slice %3 {offsets = [2, 0, 0], sizes = [1, 4, 4], strides = [1, 1, 1]} : vector<3x4x4xf32> to vector<1x4x4xf32>
    %50 = vector.shape_cast %49 : vector<1x4x4xf32> to vector<4x4xf32>
    %cst_22 = arith.constant dense<0.000000e+00> : vector<4x16xf32>
    %51 = tpu.matmul %50, %41, %cst_22 {dimension_numbers = #tpu.dot_dimension_numbers<[1], [0], [0], [1], [0, 0, 1, 1], [], []>} : vector<4x4xf32>, vector<4x16xf32>, vector<4x16xf32> -> vector<4x16xf32>
    %52 = arith.addf %48, %51 : vector<4x16xf32>
    %cst_23 = arith.constant dense<0.000000e+00> : vector<4xf32>
    %53 = vector.multi_reduction <add>, %52, %cst_23 [1] : vector<4x16xf32> to vector<4xf32>
    %54 = vector.shape_cast %53 : vector<4xf32> to vector<4x1xf32>
    %55 = arith.addf %29, %54 : vector<4x1xf32>
    %56 = arith.mulf %52, %52 : vector<4x16xf32>
    %cst_24 = arith.constant dense<0.000000e+00> : vector<4xf32>
    %57 = vector.multi_reduction <add>, %56, %cst_24 [1] : vector<4x16xf32> to vector<4xf32>
    %58 = vector.shape_cast %57 : vector<4xf32> to vector<4x1xf32>
    %59 = arith.addf %33, %58 : vector<4x1xf32>
    %c0_25 = arith.constant 0 : index
    %c0_26 = arith.constant 0 : index
    %c0_27 = arith.constant 0 : index
    %60 = vector.load %arg6[%c0_25, %c0_26, %c0_27] : memref<1x4x1xf32, #tpu.memory_space<vmem>>, vector<1x4x1xf32>
    %61 = vector.shape_cast %55 : vector<4x1xf32> to vector<1x4x1xf32>
    %62 = arith.addf %60, %61 : vector<1x4x1xf32>
    %c0_28 = arith.constant 0 : index
    %c0_29 = arith.constant 0 : index
    %c0_30 = arith.constant 0 : index
    %63 = vector.load %arg6[%c0_28, %c0_29, %c0_30] : memref<1x4x1xf32, #tpu.memory_space<vmem>>, vector<1x4x1xf32>
    tpu.vector_store %arg6[%c0_28, %c0_29, %c0_30], %62 {strides = array<i32>} : memref<1x4x1xf32, #tpu.memory_space<vmem>>, vector<1x4x1xf32>,
    %c0_31 = arith.constant 0 : index
    %c0_32 = arith.constant 0 : index
    %c0_33 = arith.constant 0 : index
    %64 = vector.load %arg7[%c0_31, %c0_32, %c0_33] : memref<1x4x1xf32, #tpu.memory_space<vmem>>, vector<1x4x1xf32>
    %65 = vector.shape_cast %59 : vector<4x1xf32> to vector<1x4x1xf32>
    %66 = arith.addf %64, %65 : vector<1x4x1xf32>
    %c0_34 = arith.constant 0 : index
    %c0_35 = arith.constant 0 : index
    %c0_36 = arith.constant 0 : index
    %67 = vector.load %arg7[%c0_34, %c0_35, %c0_36] : memref<1x4x1xf32, #tpu.memory_space<vmem>>, vector<1x4x1xf32>
    tpu.vector_store %arg7[%c0_34, %c0_35, %c0_36], %66 {strides = array<i32>} : memref<1x4x1xf32, #tpu.memory_space<vmem>>, vector<1x4x1xf32>,
    return
  }
  func.func @transform_0(%arg0: i32, %arg1: i32) -> (i32, i32, i32) {
    %c1_i32 = arith.constant 1 : i32
    %0 = arith.muli %arg0, %c1_i32 : i32
    %1 = arith.addi %0, %arg1 : i32
    %c0_i32 = arith.constant 0 : i32
    %c0_i32_0 = arith.constant 0 : i32
    %c0_i32_1 = arith.constant 0 : i32
    return %1, %c0_i32, %c0_i32_0 : i32, i32, i32
  }
  func.func @transform_1(%arg0: i32, %arg1: i32) -> (i32, i32, i32) {
    %c0_i32 = arith.constant 0 : i32
    %c0_i32_0 = arith.constant 0 : i32
    %c0_i32_1 = arith.constant 0 : i32
    %c0_i32_2 = arith.constant 0 : i32
    return %c0_i32, %c0_i32_0, %c0_i32_1 : i32, i32, i32
  }
  func.func @transform_2(%arg0: i32, %arg1: i32) -> (i32, i32) {
    %c0_i32 = arith.constant 0 : i32
    %c0_i32_0 = arith.constant 0 : i32
    %c0_i32_1 = arith.constant 0 : i32
    return %c0_i32, %c0_i32_0 : i32, i32
  }
  func.func @transform_3(%arg0: i32, %arg1: i32) -> (i32, i32) {
    %c0_i32 = arith.constant 0 : i32
    %c0_i32_0 = arith.constant 0 : i32
    %c0_i32_1 = arith.constant 0 : i32
    return %c0_i32, %c0_i32_0 : i32, i32
  }
  func.func @transform_4(%arg0: i32, %arg1: i32) -> (i32, i32, i32) {
    %c0_i32 = arith.constant 0 : i32
    %c0_i32_0 = arith.constant 0 : i32
    %c0_i32_1 = arith.constant 0 : i32
    return %arg0, %c0_i32, %c0_i32_0 : i32, i32, i32
  }
  func.func @transform_5(%arg0: i32, %arg1: i32) -> (i32, i32, i32) {
    %c0_i32 = arith.constant 0 : i32
    %c0_i32_0 = arith.constant 0 : i32
    %c0_i32_1 = arith.constant 0 : i32
    return %arg0, %c0_i32, %c0_i32_0 : i32, i32, i32
  }
}

</mosaic_0001>

<llo_original>
// kernel: tpu_custom_call.1
$region0: #{tpu_custom_call.1}
  #allocation0 [shape = 'u32[]', space=smem, size = 0x4, offset = 0x4, fixed_abs, tag = 'smem constant byte address 0x4 - core index']
  #allocation1 [shape = 'u32[144,128]{1,0:T(1,128)}', space=vmem, size = 0x12000, scoped, tag = 'internal scratch']
  %s0 = inlined_call_operand.hbm [shape: f32[2,4,16], index: 0, kind: input, shape index: {}]
  %s1 = inlined_call_operand.hbm [shape: f32[3,4,4], index: 1, kind: input, shape index: {}]
  %s2 = inlined_call_operand.vmem [shape: f32[1,16], index: 2, kind: input, shape index: {}]
  %s3 = inlined_call_operand.vmem [shape: f32[1,16], index: 3, kind: input, shape index: {}]
  %s4 = inlined_call_operand.vmem [shape: f32[1,4,1], index: 4, kind: output, shape index: {0}]
  %s5 = inlined_call_operand.vmem [shape: f32[1,4,1], index: 5, kind: output, shape index: {1}]
  %6 = xla_tuple %s4, %s5
  %s7 = sld [smem:[#allocation0]]
  $region46: #{tpu_custom_call.1} parent=0
    _
  %s9 = ssub.s32 1, %s7
  %s10 = scalar_select 0, %s9, %s7
  $region1: #{tpu_custom_call.1} parent=0
    #allocation2 [shape = 'u8[4096]{0}', space=vmem, size = 0x1000, scoped, tag = 'input window, operand 0, single buffered']
    #allocation3 [shape = 's32[1]{0}', space=sflag, size = 0x4, scoped, tag = 'scoped memory for tpu_custom_call.1']
    #allocation4 [shape = 'u8[6144]{0}', space=vmem, size = 0x1800, scoped, tag = 'input window, operand 1, single buffered']
    #allocation5 [shape = 's32[1]{0}', space=sflag, size = 0x4, scoped, tag = 'scoped memory for tpu_custom_call.1']
    %11 = vsyncpa [#allocation3], 0
    %12 = vsyncpa [#allocation5], 0
    // Predicated region
    $region2: #{tpu_custom_call.1} parent=1 // pred_check
      _
    $region3: #{tpu_custom_call.1} parent=1 // pred_check_branch
      %14 = sbr.rel (0) target = $region5
    $region4: #{tpu_custom_call.1} parent=1 // pred_region
      %s15 = sadd.s32 0, 0
      %s16 = smul.u32 2, %s15
      %s18 = ssub.s32 128, 128
      %19 = vsyncadd [#allocation3], %s18
      %s20 = smul.addr %s16, 64
      %s21 = scalar_lea.hbm %s0, %s20
      %s22 = sshll.u32 [#allocation2], 4
      %s23 = int_to_ptr.vmem [resolvable:$true] %s22
      %28 = dma.hbm_to_vmem [thread:$0]  %s21, 128, %s23, [#allocation3], 64, 64, 4
    $region5: #{tpu_custom_call.1} parent=1 // pred_fallthru
      _
    // Predicated region
    $region6: #{tpu_custom_call.1} parent=1 // pred_check
      _
    $region7: #{tpu_custom_call.1} parent=1 // pred_check_branch
      %30 = sbr.rel (0) target = $region9
    $region8: #{tpu_custom_call.1} parent=1 // pred_region
      %s32 = ssub.s32 192, 192
      %33 = vsyncadd [#allocation5], %s32
      %s34 = sshll.u32 [#allocation4], 4
      %s35 = int_to_ptr.vmem [resolvable:$true] %s34
      %40 = dma.hbm_to_vmem [thread:$0]  %s1, 192, %s35, [#allocation5], 64, 64, 4
    $region9: #{tpu_custom_call.1} parent=1 // pred_fallthru
      _
    // Predicated region
    $region10: #{tpu_custom_call.1} parent=1 // pred_check
      _
    $region11: #{tpu_custom_call.1} parent=1 // pred_check_branch
      %42 = sbr.rel (0) target = $region13
    $region12: #{tpu_custom_call.1} parent=1 // pred_region
      _
    $region13: #{tpu_custom_call.1} parent=1 // pred_fallthru
      _
    // Predicated region
    $region14: #{tpu_custom_call.1} parent=1 // pred_check
      _
    $region15: #{tpu_custom_call.1} parent=1 // pred_check_branch
      %44 = sbr.rel (0) target = $region17
    $region16: #{tpu_custom_call.1} parent=1 // pred_region
      _
    $region17: #{tpu_custom_call.1} parent=1 // pred_fallthru
      _
    // Predicated region
    $region18: #{tpu_custom_call.1} parent=1 // pred_check
      _
    $region19: #{tpu_custom_call.1} parent=1 // pred_check_branch
      %46 = sbr.rel (0) target = $region21
    $region20: #{tpu_custom_call.1} parent=1 // pred_region
      %47 = dma.done [#allocation3], 128
    $region21: #{tpu_custom_call.1} parent=1 // pred_fallthru
      _
    // Predicated region
    $region22: #{tpu_custom_call.1} parent=1 // pred_check
      _
    $region23: #{tpu_custom_call.1} parent=1 // pred_check_branch
      %49 = sbr.rel (0) target = $region25
    $region24: #{tpu_custom_call.1} parent=1 // pred_region
      %50 = dma.done [#allocation5], 192
    $region25: #{tpu_custom_call.1} parent=1 // pred_fallthru
      _
    %s51 = sadd.s32 0, 0
    %s52 = smul.u32 2, %s51
    %p53 = scmp.eq.s32.totalorder 0, 0
    // Predicated region
    $region26: #{tpu_custom_call.1} parent=1 // pred_check
      %p54 = pneg %p53
    $region27: #{tpu_custom_call.1} parent=1 // pred_check_branch
      %56 = sbr.rel (%p54) target = $region29
    $region28: #{tpu_custom_call.1} parent=1 // pred_region
      %vm57 = vcmask 3072
      %58 = vst.msk [vmem:[%s4] sm:$0xf] %vm57, 0.0
      %59 = vst.msk [vmem:[%s5] sm:$0xf] %vm57, 0.0
    $region29: #{tpu_custom_call.1} parent=1 // pred_fallthru
      _
    %v60 = vld [vmem:[#allocation4] sm:$0xf]
    %v61 = vld [vmem:[#allocation4 + $0x4] sm:$0xf]
    %v62 = vld [vmem:[#allocation4 + $0x8] sm:$0xf]
    %v63 = vld [vmem:[%s2] sm:$0x1]
    %v64 = vld [vmem:[%s3] sm:$0x1]
    %v65 = vld [vmem:[#allocation2] sm:$0xf]
    %vm66 = vcmask 1047680
    %67 = vrot.lane.b32.xlu0 %v65, 16
    %v68 = vpop.permute.xlu0 %67
    %v69 = vsel %vm66, %v68, %v65
    %70 = vrot.lane.b32.xlu0 %v69, 16
    %v71 = vpop.permute.xlu0 %70
    %v72 = vsel %vm66, %v71, %v65
    %v74 = vlaneseq
    %v75 = vshrl.u32 %v74, 7
    %v76 = vsub.s32 0, %v75
    %v77 = vrot.slane %v63, %v76
    %78 = vrot.lane.b32.xlu0 %v77, 15
    %v79 = vpop.permute.xlu0 %78
    %v81 = vmul.f32 %v72, %v79
    %v83 = vlaneseq
    %v84 = vshrl.u32 %v83, 7
    %v85 = vsub.s32 0, %v84
    %v86 = vrot.slane %v64, %v85
    %87 = vrot.lane.b32.xlu0 %v86, 1
    %v88 = vpop.permute.xlu0 %87
    %v90 = vmul.f32 %v72, %v88
    %92 = vrot.lane.b32.xlu0 %v81, 113
    %v93 = vpop.permute.xlu0 %92
    %vm94 = vcmask 31744
    %v96 = vsel %vm94, %v61, 0
    %vm98 = vcmask 1043456
    %v99 = vsel %vm98, %v93, 0
    %101 = vmatprep.subr.mxu0 0.0
    %102 = vmatpush1.msra.mxu0 %v99
    %103 = vmatprep.subr.mxu0 0.0
    %104 = vmatpush1.msra.mxu0 0.0
    %105 = vmatprep.subr.mxu0 0.0
    %106 = vmatpush1.msra.mxu0 0.0
    %107 = vmatprep.subr.mxu0 0.0
    %108 = vmatpush1.msra.mxu0 0.0
    %109 = vmatprep.subr.mxu0 0.0
    %110 = vmatpush1.msra.mxu0 0.0
    %111 = vmatprep.subr.mxu0 0.0
    %112 = vmatpush1.msra.mxu0 0.0
    %113 = vmatprep.subr.mxu0 0.0
    %114 = vmatpush1.msra.mxu0 0.0
    %115 = vmatprep.subr.mxu0 0.0
    %116 = vmatpush1.msra.mxu0 0.0
    %117 = vmatprep.subr.mxu0 0.0
    %118 = vmatpush1.msra.mxu0 0.0
    %119 = vmatprep.subr.mxu0 0.0
    %120 = vmatpush1.msra.mxu0 0.0
    %121 = vmatprep.subr.mxu0 0.0
    %122 = vmatpush1.msra.mxu0 0.0
    %123 = vmatprep.subr.mxu0 0.0
    %124 = vmatpush1.msra.mxu0 0.0
    %125 = vmatprep.subr.mxu0 0.0
    %126 = vmatpush1.msra.mxu0 0.0
    %127 = vmatprep.subr.mxu0 0.0
    %128 = vmatpush1.msra.mxu0 0.0
    %129 = vmatprep.subr.mxu0 0.0
    %130 = vmatpush1.msra.mxu0 0.0
    %131 = vmatprep.subr.mxu0 0.0
    %132 = vmatpush1.msra.mxu0 0.0
    %133 = vmatprep.subr.mxu0 0.0
    %134 = vmatpush1.msra.mxu0 0.0
    %135 = vmatprep.subr.mxu0 0.0
    %136 = vmatpush1.msra.mxu0 0.0
    %137 = vmatprep.subr.mxu0 0.0
    %138 = vmatpush1.msra.mxu0 0.0
    %139 = vmatprep.subr.mxu0 0.0
    %140 = vmatpush1.msra.mxu0 0.0
    %141 = vmatprep.subr.mxu0 0.0
    %142 = vmatpush1.msra.mxu0 0.0
    %143 = vmatprep.subr.mxu0 0.0
    %144 = vmatpush1.msra.mxu0 0.0
    %145 = vmatprep.subr.mxu0 0.0
    %146 = vmatpush1.msra.mxu0 0.0
    %147 = vmatprep.subr.mxu0 0.0
    %148 = vmatpush1.msra.mxu0 0.0
    %149 = vmatprep.subr.mxu0 0.0
    %150 = vmatpush1.msra.mxu0 0.0
    %151 = vmatprep.subr.mxu0 0.0
    %152 = vmatpush1.msra.mxu0 0.0
    %153 = vmatprep.subr.mxu0 0.0
    %154 = vmatpush1.msra.mxu0 0.0
    %155 = vmatprep.subr.mxu0 0.0
    %156 = vmatpush1.msra.mxu0 0.0
    %157 = vmatprep.subr.mxu0 0.0
    %158 = vmatpush1.msra.mxu0 0.0
    %159 = vmatprep.subr.mxu0 0.0
    %160 = vmatpush1.msra.mxu0 0.0
    %161 = vmatprep.subr.mxu0 0.0
    %162 = vmatpush1.msra.mxu0 0.0
    %163 = vmatprep.subr.mxu0 0.0
    %164 = vmatpush1.msra.mxu0 0.0
    %165 = vmatprep.mubr.f32.mxu0 0.0
    %166 = vmatmul.mubr.f32.gmra.mrb[0].mxu0 %v96
    %v167 = vpop.f32.mrb[0].mxu0
    %v168 = vadd.f32 0.0, %v167
    %v169 = vpop.f32.mrb[0].mxu0
    %170 = vdwg.mxu0
    %v172 = vsel %vm94, %v60, 0
    %v175 = vsel %vm98, %v65, 0
    %177 = vmatprep.subr.mxu0 0.0
    %178 = vmatpush1.msra.mxu0 %v175
    %179 = vmatprep.subr.mxu0 0.0
    %180 = vmatpush1.msra.mxu0 0.0
    %181 = vmatprep.subr.mxu0 0.0
    %182 = vmatpush1.msra.mxu0 0.0
    %183 = vmatprep.subr.mxu0 0.0
    %184 = vmatpush1.msra.mxu0 0.0
    %185 = vmatprep.subr.mxu0 0.0
    %186 = vmatpush1.msra.mxu0 0.0
    %187 = vmatprep.subr.mxu0 0.0
    %188 = vmatpush1.msra.mxu0 0.0
    %189 = vmatprep.subr.mxu0 0.0
    %190 = vmatpush1.msra.mxu0 0.0
    %191 = vmatprep.subr.mxu0 0.0
    %192 = vmatpush1.msra.mxu0 0.0
    %193 = vmatprep.subr.mxu0 0.0
    %194 = vmatpush1.msra.mxu0 0.0
    %195 = vmatprep.subr.mxu0 0.0
    %196 = vmatpush1.msra.mxu0 0.0
    %197 = vmatprep.subr.mxu0 0.0
    %198 = vmatpush1.msra.mxu0 0.0
    %199 = vmatprep.subr.mxu0 0.0
    %200 = vmatpush1.msra.mxu0 0.0
    %201 = vmatprep.subr.mxu0 0.0
    %202 = vmatpush1.msra.mxu0 0.0
    %203 = vmatprep.subr.mxu0 0.0
    %204 = vmatpush1.msra.mxu0 0.0
    %205 = vmatprep.subr.mxu0 0.0
    %206 = vmatpush1.msra.mxu0 0.0
    %207 = vmatprep.subr.mxu0 0.0
    %208 = vmatpush1.msra.mxu0 0.0
    %209 = vmatprep.subr.mxu0 0.0
    %210 = vmatpush1.msra.mxu0 0.0
    %211 = vmatprep.subr.mxu0 0.0
    %212 = vmatpush1.msra.mxu0 0.0
    %213 = vmatprep.subr.mxu0 0.0
    %214 = vmatpush1.msra.mxu0 0.0
    %215 = vmatprep.subr.mxu0 0.0
    %216 = vmatpush1.msra.mxu0 0.0
    %217 = vmatprep.subr.mxu0 0.0
    %218 = vmatpush1.msra.mxu0 0.0
    %219 = vmatprep.subr.mxu0 0.0
    %220 = vmatpush1.msra.mxu0 0.0
    %221 = vmatprep.subr.mxu0 0.0
    %222 = vmatpush1.msra.mxu0 0.0
    %223 = vmatprep.subr.mxu0 0.0
    %224 = vmatpush1.msra.mxu0 0.0
    %225 = vmatprep.subr.mxu0 0.0
    %226 = vmatpush1.msra.mxu0 0.0
    %227 = vmatprep.subr.mxu0 0.0
    %228 = vmatpush1.msra.mxu0 0.0
    %229 = vmatprep.subr.mxu0 0.0
    %230 = vmatpush1.msra.mxu0 0.0
    %231 = vmatprep.subr.mxu0 0.0
    %232 = vmatpush1.msra.mxu0 0.0
    %233 = vmatprep.subr.mxu0 0.0
    %234 = vmatpush1.msra.mxu0 0.0
    %235 = vmatprep.subr.mxu0 0.0
    %236 = vmatpush1.msra.mxu0 0.0
    %237 = vmatprep.subr.mxu0 0.0
    %238 = vmatpush1.msra.mxu0 0.0
    %239 = vmatprep.subr.mxu0 0.0
    %240 = vmatpush1.msra.mxu0 0.0
    %241 = vmatprep.mubr.f32.mxu0 0.0
    %242 = vmatmul.mubr.f32.gmra.mrb[0].mxu0 %v172
    %v243 = vpop.f32.mrb[0].mxu0
    %v244 = vadd.f32 %v168, %v243
    %v245 = vpop.f32.mrb[0].mxu0
    %246 = vdwg.mxu0
    %248 = vrot.lane.b32.xlu0 %v90, 127
    %v249 = vpop.permute.xlu0 %248
    %v251 = vsel %vm94, %v62, 0
    %v253 = vsel %vm98, %v249, 0
    %255 = vmatprep.subr.mxu0 0.0
    %256 = vmatpush1.msra.mxu0 %v253
    %257 = vmatprep.subr.mxu0 0.0
    %258 = vmatpush1.msra.mxu0 0.0
    %259 = vmatprep.subr.mxu0 0.0
    %260 = vmatpush1.msra.mxu0 0.0
    %261 = vmatprep.subr.mxu0 0.0
    %262 = vmatpush1.msra.mxu0 0.0
    %263 = vmatprep.subr.mxu0 0.0
    %264 = vmatpush1.msra.mxu0 0.0
    %265 = vmatprep.subr.mxu0 0.0
    %266 = vmatpush1.msra.mxu0 0.0
    %267 = vmatprep.subr.mxu0 0.0
    %268 = vmatpush1.msra.mxu0 0.0
    %269 = vmatprep.subr.mxu0 0.0
    %270 = vmatpush1.msra.mxu0 0.0
    %271 = vmatprep.subr.mxu0 0.0
    %272 = vmatpush1.msra.mxu0 0.0
    %273 = vmatprep.subr.mxu0 0.0
    %274 = vmatpush1.msra.mxu0 0.0
    %275 = vmatprep.subr.mxu0 0.0
    %276 = vmatpush1.msra.mxu0 0.0
    %277 = vmatprep.subr.mxu0 0.0
    %278 = vmatpush1.msra.mxu0 0.0
    %279 = vmatprep.subr.mxu0 0.0
    %280 = vmatpush1.msra.mxu0 0.0
    %281 = vmatprep.subr.mxu0 0.0
    %282 = vmatpush1.msra.mxu0 0.0
    %283 = vmatprep.subr.mxu0 0.0
    %284 = vmatpush1.msra.mxu0 0.0
    %285 = vmatprep.subr.mxu0 0.0
    %286 = vmatpush1.msra.mxu0 0.0
    %287 = vmatprep.subr.mxu0 0.0
    %288 = vmatpush1.msra.mxu0 0.0
    %289 = vmatprep.subr.mxu0 0.0
    %290 = vmatpush1.msra.mxu0 0.0
    %291 = vmatprep.subr.mxu0 0.0
    %292 = vmatpush1.msra.mxu0 0.0
    %293 = vmatprep.subr.mxu0 0.0
    %294 = vmatpush1.msra.mxu0 0.0
    %295 = vmatprep.subr.mxu0 0.0
    %296 = vmatpush1.msra.mxu0 0.0
    %297 = vmatprep.subr.mxu0 0.0
    %298 = vmatpush1.msra.mxu0 0.0
    %299 = vmatprep.subr.mxu0 0.0
    %300 = vmatpush1.msra.mxu0 0.0
    %301 = vmatprep.subr.mxu0 0.0
    %302 = vmatpush1.msra.mxu0 0.0
    %303 = vmatprep.subr.mxu0 0.0
    %304 = vmatpush1.msra.mxu0 0.0
    %305 = vmatprep.subr.mxu0 0.0
    %306 = vmatpush1.msra.mxu0 0.0
    %307 = vmatprep.subr.mxu0 0.0
    %308 = vmatpush1.msra.mxu0 0.0
    %309 = vmatprep.subr.mxu0 0.0
    %310 = vmatpush1.msra.mxu0 0.0
    %311 = vmatprep.subr.mxu0 0.0
    %312 = vmatpush1.msra.mxu0 0.0
    %313 = vmatprep.subr.mxu0 0.0
    %314 = vmatpush1.msra.mxu0 0.0
    %315 = vmatprep.subr.mxu0 0.0
    %316 = vmatpush1.msra.mxu0 0.0
    %317 = vmatprep.subr.mxu0 0.0
    %318 = vmatpush1.msra.mxu0 0.0
    %319 = vmatprep.mubr.f32.mxu0 0.0
    %320 = vmatmul.mubr.f32.gmra.mrb[0].mxu0 %v251
    %v321 = vpop.f32.mrb[0].mxu0
    %v322 = vadd.f32 0.0, %v321
    %v323 = vpop.f32.mrb[0].mxu0
    %324 = vdwg.mxu0
    %v325 = vadd.f32 %v244, %v322
    %vm326 = vcmask 125952
    %v327 = vsel %vm326, %v325, 0.0
    %328 = vadd.xlane.f32.xlu0 %v327
    %v329 = vpop.xlane.xlu0 %328
    %v330 = vadd.f32 %v329, 0.0
    %v331 = vmul.f32 %v325, %v325
    %v332 = vsel %vm326, %v331, 0.0
    %333 = vadd.xlane.f32.xlu0 %v332
    %v334 = vpop.xlane.xlu0 %333
    %v335 = vadd.f32 %v334, 0.0
    %s336 = scalar_lea.vmem [#allocation2], 4
    %v337 = vld [vmem:[%s336] sm:$0xf]
    %338 = vrot.lane.b32.xlu0 %v337, 16
    %v339 = vpop.permute.xlu0 %338
    %v340 = vsel %vm66, %v339, %v337
    %341 = vrot.lane.b32.xlu0 %v340, 16
    %v342 = vpop.permute.xlu0 %341
    %v343 = vsel %vm66, %v342, %v337
    %v344 = vmul.f32 %v343, %v79
    %v345 = vmul.f32 %v343, %v88
    %347 = vrot.lane.b32.xlu0 %v344, 113
    %v348 = vpop.permute.xlu0 %347
    %v349 = vsel %vm98, %v348, 0
    %351 = vmatprep.subr.mxu0 0.0
    %352 = vmatpush1.msra.mxu0 %v349
    %353 = vmatprep.subr.mxu0 0.0
    %354 = vmatpush1.msra.mxu0 0.0
    %355 = vmatprep.subr.mxu0 0.0
    %356 = vmatpush1.msra.mxu0 0.0
    %357 = vmatprep.subr.mxu0 0.0
    %358 = vmatpush1.msra.mxu0 0.0
    %359 = vmatprep.subr.mxu0 0.0
    %360 = vmatpush1.msra.mxu0 0.0
    %361 = vmatprep.subr.mxu0 0.0
    %362 = vmatpush1.msra.mxu0 0.0
    %363 = vmatprep.subr.mxu0 0.0
    %364 = vmatpush1.msra.mxu0 0.0
    %365 = vmatprep.subr.mxu0 0.0
    %366 = vmatpush1.msra.mxu0 0.0
    %367 = vmatprep.subr.mxu0 0.0
    %368 = vmatpush1.msra.mxu0 0.0
    %369 = vmatprep.subr.mxu0 0.0
    %370 = vmatpush1.msra.mxu0 0.0
    %371 = vmatprep.subr.mxu0 0.0
    %372 = vmatpush1.msra.mxu0 0.0
    %373 = vmatprep.subr.mxu0 0.0
    %374 = vmatpush1.msra.mxu0 0.0
    %375 = vmatprep.subr.mxu0 0.0
    %376 = vmatpush1.msra.mxu0 0.0
    %377 = vmatprep.subr.mxu0 0.0
    %378 = vmatpush1.msra.mxu0 0.0
    %379 = vmatprep.subr.mxu0 0.0
    %380 = vmatpush1.msra.mxu0 0.0
    %381 = vmatprep.subr.mxu0 0.0
    %382 = vmatpush1.msra.mxu0 0.0
    %383 = vmatprep.subr.mxu0 0.0
    %384 = vmatpush1.msra.mxu0 0.0
    %385 = vmatprep.subr.mxu0 0.0
    %386 = vmatpush1.msra.mxu0 0.0
    %387 = vmatprep.subr.mxu0 0.0
    %388 = vmatpush1.msra.mxu0 0.0
    %389 = vmatprep.subr.mxu0 0.0
    %390 = vmatpush1.msra.mxu0 0.0
    %391 = vmatprep.subr.mxu0 0.0
    %392 = vmatpush1.msra.mxu0 0.0
    %393 = vmatprep.subr.mxu0 0.0
    %394 = vmatpush1.msra.mxu0 0.0
    %395 = vmatprep.subr.mxu0 0.0
    %396 = vmatpush1.msra.mxu0 0.0
    %397 = vmatprep.subr.mxu0 0.0
    %398 = vmatpush1.msra.mxu0 0.0
    %399 = vmatprep.subr.mxu0 0.0
    %400 = vmatpush1.msra.mxu0 0.0
    %401 = vmatprep.subr.mxu0 0.0
    %402 = vmatpush1.msra.mxu0 0.0
    %403 = vmatprep.subr.mxu0 0.0
    %404 = vmatpush1.msra.mxu0 0.0
    %405 = vmatprep.subr.mxu0 0.0
    %406 = vmatpush1.msra.mxu0 0.0
    %407 = vmatprep.subr.mxu0 0.0
    %408 = vmatpush1.msra.mxu0 0.0
    %409 = vmatprep.subr.mxu0 0.0
    %410 = vmatpush1.msra.mxu0 0.0
    %411 = vmatprep.subr.mxu0 0.0
    %412 = vmatpush1.msra.mxu0 0.0
    %413 = vmatprep.subr.mxu0 0.0
    %414 = vmatpush1.msra.mxu0 0.0
    %415 = vmatprep.mubr.f32.mxu0 0.0
    %416 = vmatmul.mubr.f32.gmra.mrb[0].mxu0 %v96
    %v417 = vpop.f32.mrb[0].mxu0
    %v418 = vadd.f32 0.0, %v417
    %v419 = vpop.f32.mrb[0].mxu0
    %420 = vdwg.mxu0
    %v422 = vsel %vm98, %v337, 0
    %424 = vmatprep.subr.mxu0 0.0
    %425 = vmatpush1.msra.mxu0 %v422
    %426 = vmatprep.subr.mxu0 0.0
    %427 = vmatpush1.msra.mxu0 0.0
    %428 = vmatprep.subr.mxu0 0.0
    %429 = vmatpush1.msra.mxu0 0.0
    %430 = vmatprep.subr.mxu0 0.0
    %431 = vmatpush1.msra.mxu0 0.0
    %432 = vmatprep.subr.mxu0 0.0
    %433 = vmatpush1.msra.mxu0 0.0
    %434 = vmatprep.subr.mxu0 0.0
    %435 = vmatpush1.msra.mxu0 0.0
    %436 = vmatprep.subr.mxu0 0.0
    %437 = vmatpush1.msra.mxu0 0.0
    %438 = vmatprep.subr.mxu0 0.0
    %439 = vmatpush1.msra.mxu0 0.0
    %440 = vmatprep.subr.mxu0 0.0
    %441 = vmatpush1.msra.mxu0 0.0
    %442 = vmatprep.subr.mxu0 0.0
    %443 = vmatpush1.msra.mxu0 0.0
    %444 = vmatprep.subr.mxu0 0.0
    %445 = vmatpush1.msra.mxu0 0.0
    %446 = vmatprep.subr.mxu0 0.0
    %447 = vmatpush1.msra.mxu0 0.0
    %448 = vmatprep.subr.mxu0 0.0
    %449 = vmatpush1.msra.mxu0 0.0
    %450 = vmatprep.subr.mxu0 0.0
    %451 = vmatpush1.msra.mxu0 0.0
    %452 = vmatprep.subr.mxu0 0.0
    %453 = vmatpush1.msra.mxu0 0.0
    %454 = vmatprep.subr.mxu0 0.0
    %455 = vmatpush1.msra.mxu0 0.0
    %456 = vmatprep.subr.mxu0 0.0
    %457 = vmatpush1.msra.mxu0 0.0
    %458 = vmatprep.subr.mxu0 0.0
    %459 = vmatpush1.msra.mxu0 0.0
    %460 = vmatprep.subr.mxu0 0.0
    %461 = vmatpush1.msra.mxu0 0.0
    %462 = vmatprep.subr.mxu0 0.0
    %463 = vmatpush1.msra.mxu0 0.0
    %464 = vmatprep.subr.mxu0 0.0
    %465 = vmatpush1.msra.mxu0 0.0
    %466 = vmatprep.subr.mxu0 0.0
    %467 = vmatpush1.msra.mxu0 0.0
    %468 = vmatprep.subr.mxu0 0.0
    %469 = vmatpush1.msra.mxu0 0.0
    %470 = vmatprep.subr.mxu0 0.0
    %471 = vmatpush1.msra.mxu0 0.0
    %472 = vmatprep.subr.mxu0 0.0
    %473 = vmatpush1.msra.mxu0 0.0
    %474 = vmatprep.subr.mxu0 0.0
    %475 = vmatpush1.msra.mxu0 0.0
    %476 = vmatprep.subr.mxu0 0.0
    %477 = vmatpush1.msra.mxu0 0.0
    %478 = vmatprep.subr.mxu0 0.0
    %479 = vmatpush1.msra.mxu0 0.0
    %480 = vmatprep.subr.mxu0 0.0
    %481 = vmatpush1.msra.mxu0 0.0
    %482 = vmatprep.subr.mxu0 0.0
    %483 = vmatpush1.msra.mxu0 0.0
    %484 = vmatprep.subr.mxu0 0.0
    %485 = vmatpush1.msra.mxu0 0.0
    %486 = vmatprep.subr.mxu0 0.0
    %487 = vmatpush1.msra.mxu0 0.0
    %488 = vmatprep.mubr.f32.mxu0 0.0
    %489 = vmatmul.mubr.f32.gmra.mrb[0].mxu0 %v172
    %v490 = vpop.f32.mrb[0].mxu0
    %v491 = vadd.f32 %v418, %v490
    %v492 = vpop.f32.mrb[0].mxu0
    %493 = vdwg.mxu0
    %495 = vrot.lane.b32.xlu0 %v345, 127
    %v496 = vpop.permute.xlu0 %495
    %v497 = vsel %vm98, %v496, 0
    %499 = vmatprep.subr.mxu0 0.0
    %500 = vmatpush1.msra.mxu0 %v497
    %501 = vmatprep.subr.mxu0 0.0
    %502 = vmatpush1.msra.mxu0 0.0
    %503 = vmatprep.subr.mxu0 0.0
    %504 = vmatpush1.msra.mxu0 0.0
    %505 = vmatprep.subr.mxu0 0.0
    %506 = vmatpush1.msra.mxu0 0.0
    %507 = vmatprep.subr.mxu0 0.0
    %508 = vmatpush1.msra.mxu0 0.0
    %509 = vmatprep.subr.mxu0 0.0
    %510 = vmatpush1.msra.mxu0 0.0
    %511 = vmatprep.subr.mxu0 0.0
    %512 = vmatpush1.msra.mxu0 0.0
    %513 = vmatprep.subr.mxu0 0.0
    %514 = vmatpush1.msra.mxu0 0.0
    %515 = vmatprep.subr.mxu0 0.0
    %516 = vmatpush1.msra.mxu0 0.0
    %517 = vmatprep.subr.mxu0 0.0
    %518 = vmatpush1.msra.mxu0 0.0
    %519 = vmatprep.subr.mxu0 0.0
    %520 = vmatpush1.msra.mxu0 0.0
    %521 = vmatprep.subr.mxu0 0.0
    %522 = vmatpush1.msra.mxu0 0.0
    %523 = vmatprep.subr.mxu0 0.0
    %524 = vmatpush1.msra.mxu0 0.0
    %525 = vmatprep.subr.mxu0 0.0
    %526 = vmatpush1.msra.mxu0 0.0
    %527 = vmatprep.subr.mxu0 0.0
    %528 = vmatpush1.msra.mxu0 0.0
    %529 = vmatprep.subr.mxu0 0.0
    %530 = vmatpush1.msra.mxu0 0.0
    %531 = vmatprep.subr.mxu0 0.0
    %532 = vmatpush1.msra.mxu0 0.0
    %533 = vmatprep.subr.mxu0 0.0
    %534 = vmatpush1.msra.mxu0 0.0
    %535 = vmatprep.subr.mxu0 0.0
    %536 = vmatpush1.msra.mxu0 0.0
    %537 = vmatprep.subr.mxu0 0.0
    %538 = vmatpush1.msra.mxu0 0.0
    %539 = vmatprep.subr.mxu0 0.0
    %540 = vmatpush1.msra.mxu0 0.0
    %541 = vmatprep.subr.mxu0 0.0
    %542 = vmatpush1.msra.mxu0 0.0
    %543 = vmatprep.subr.mxu0 0.0
    %544 = vmatpush1.msra.mxu0 0.0
    %545 = vmatprep.subr.mxu0 0.0
    %546 = vmatpush1.msra.mxu0 0.0
    %547 = vmatprep.subr.mxu0 0.0
    %548 = vmatpush1.msra.mxu0 0.0
    %549 = vmatprep.subr.mxu0 0.0
    %550 = vmatpush1.msra.mxu0 0.0
    %551 = vmatprep.subr.mxu0 0.0
    %552 = vmatpush1.msra.mxu0 0.0
    %553 = vmatprep.subr.mxu0 0.0
    %554 = vmatpush1.msra.mxu0 0.0
    %555 = vmatprep.subr.mxu0 0.0
    %556 = vmatpush1.msra.mxu0 0.0
    %557 = vmatprep.subr.mxu0 0.0
    %558 = vmatpush1.msra.mxu0 0.0
    %559 = vmatprep.subr.mxu0 0.0
    %560 = vmatpush1.msra.mxu0 0.0
    %561 = vmatprep.subr.mxu0 0.0
    %562 = vmatpush1.msra.mxu0 0.0
    %563 = vmatprep.mubr.f32.mxu0 0.0
    %564 = vmatmul.mubr.f32.gmra.mrb[0].mxu0 %v251
    %v565 = vpop.f32.mrb[0].mxu0
    %v566 = vadd.f32 0.0, %v565
    %v567 = vpop.f32.mrb[0].mxu0
    %568 = vdwg.mxu0
    %v569 = vadd.f32 %v491, %v566
    %v570 = vsel %vm326, %v569, 0.0
    %571 = vadd.xlane.f32.xlu0 %v570
    %v572 = vpop.xlane.xlu0 %571
    %v573 = vadd.f32 %v330, %v572
    %v574 = vmul.f32 %v569, %v569
    %v575 = vsel %vm326, %v574, 0.0
    %576 = vadd.xlane.f32.xlu0 %v575
    %v577 = vpop.xlane.xlu0 %576
    %v578 = vadd.f32 %v335, %v577
    %v579 = vld [vmem:[%s4] sm:$0xf]
    %v580 = vadd.f32 %v579, %v573
    %vm581 = vcmask 3072
    %582 = vst.msk [vmem:[%s4] sm:$0xf] %vm581, %v580
    %v583 = vld [vmem:[%s5] sm:$0xf]
    %v584 = vadd.f32 %v583, %v578
    %585 = vst.msk [vmem:[%s5] sm:$0xf] %vm581, %v584
    // Predicated region
    $region30: #{tpu_custom_call.1} parent=1 // pred_check
      _
    $region31: #{tpu_custom_call.1} parent=1 // pred_check_branch
      %587 = sbr.rel (0) target = $region33
    $region32: #{tpu_custom_call.1} parent=1 // pred_region
      _
    $region33: #{tpu_custom_call.1} parent=1 // pred_fallthru
      _
    // Predicated region
    $region34: #{tpu_custom_call.1} parent=1 // pred_check
      _
    $region35: #{tpu_custom_call.1} parent=1 // pred_check_branch
      %589 = sbr.rel (0) target = $region37
    $region36: #{tpu_custom_call.1} parent=1 // pred_region
      _
    $region37: #{tpu_custom_call.1} parent=1 // pred_fallthru
      _
    // Predicated region
    $region38: #{tpu_custom_call.1} parent=1 // pred_check
      _
    $region39: #{tpu_custom_call.1} parent=1 // pred_check_branch
      %591 = sbr.rel (0) target = $region41
    $region40: #{tpu_custom_call.1} parent=1 // pred_region
      _
    $region41: #{tpu_custom_call.1} parent=1 // pred_fallthru
      _
    // Predicated region
    $region42: #{tpu_custom_call.1} parent=1 // pred_check
      _
    $region43: #{tpu_custom_call.1} parent=1 // pred_check_branch
      %593 = sbr.rel (0) target = $region45
    $region44: #{tpu_custom_call.1} parent=1 // pred_region
      _
    $region45: #{tpu_custom_call.1} parent=1 // pred_fallthru
      _
    %594 = vsyncpa [#allocation3], 1
    %595 = vsyncpa [#allocation5], 1

</llo_original>
